<compile_context>
chip_gen: v7x
topology: tpu7x:2x2x1
jax: 0.10.0
libtpu: 0.0.40
codegen_flags: <defaults>
</compile_context>

<pallas_src>
import jax
import jax.numpy as jnp
from jax import lax
from jax.experimental import pallas as pl
from jax.experimental.pallas import tpu as pltpu


def _vicreg_kernel(sim_coeff, std_coeff, cov_coeff, B, D, tb, td, mm_dtype):
    contract = (((0,), (0,)), ((), ()))  # contract over the batch (sublane) dim
    nb_static = B // tb
    inv_bm1 = 1.0 / float(B - 1)
    sim_scale = float(sim_coeff) / (float(B) * float(D))
    std_scale = float(std_coeff) / (2.0 * float(D))
    cov_scale = float(cov_coeff) / float(D)

    def kernel(iof_ref, jof_ref, xi_ref, yi_ref, xj_ref, yj_ref,
               mx_ref, my_ref, out_ref,
               sx_ref, sy_ref, dssx_ref, dssy_ref, sse_ref):
        t = pl.program_id(0)
        b = pl.program_id(1)
        last_b = b == pl.num_programs(1) - 1
        i_blk = iof_ref[t]
        j_blk = jof_ref[t]
        is_diag = i_blk == j_blk

        # ---- per-tile-pair accumulators: reset on the first batch step -----
        @pl.when(b == 0)
        def _init():
            sx_ref[...] = jnp.zeros_like(sx_ref)
            sy_ref[...] = jnp.zeros_like(sy_ref)
            dssx_ref[...] = jnp.zeros_like(dssx_ref)
            dssy_ref[...] = jnp.zeros_like(dssy_ref)
            sse_ref[...] = jnp.zeros_like(sse_ref)

        # ---- this batch tile's rows of the resident i-panels ---------------
        if nb_static == 1:
            xi = xi_ref[...]
            yi = yi_ref[...]
        else:
            row0 = pl.multiple_of(b * tb, tb)
            xi = xi_ref[pl.ds(row0, tb), :]
            yi = yi_ref[pl.ds(row0, tb), :]

        xj32 = xj_ref[...].astype(jnp.float32)
        yj32 = yj_ref[...].astype(jnp.float32)
        # One-sided centering: sum_b x_bi (x_bj - m_j) equals the fully
        # centered sum_b (x_bi - m_i)(x_bj - m_j) (the cross term vanishes),
        # so only the small streamed j-block has to be centered.
        xjc = xj32 - mx_ref[...]
        yjc = yj32 - my_ref[...]

        xi_mm = xi if xi.dtype == mm_dtype else xi.astype(mm_dtype)
        yi_mm = yi if yi.dtype == mm_dtype else yi.astype(mm_dtype)
        if mm_dtype == jnp.float32:
            xjc_mm, yjc_mm = xjc, yjc
        else:
            xjc_mm, yjc_mm = xjc.astype(mm_dtype), yjc.astype(mm_dtype)

        # ---- streaming centered second moments (MXU, f32 accumulation) -----
        sx_ref[...] += lax.dot_general(xi_mm, xjc_mm, contract,
                                       preferred_element_type=jnp.float32)
        sy_ref[...] += lax.dot_general(yi_mm, yjc_mm, contract,
                                       preferred_element_type=jnp.float32)

        # ---- diagonal tiles own the MSE and variance accumulators ----------
        # (each (batch, feature) element is visited by exactly one diag tile)
        @pl.when(is_diag)
        def _diag_stream():
            d = xj32 - yj32
            sse_ref[...] += jnp.sum(d * d)
            dssx_ref[...] += jnp.sum(xjc * xjc, axis=0, keepdims=True)
            dssy_ref[...] += jnp.sum(yjc * yjc, axis=0, keepdims=True)

        # ---- finalize this tile pair on the last batch step -----------------
        @pl.when(last_b)
        def _finalize():
            cov_x = sx_ref[...] * inv_bm1
            cov_y = sy_ref[...] * inv_bm1
            frob = jnp.sum(cov_x * cov_x) + jnp.sum(cov_y * cov_y)

            var_x = dssx_ref[...] * inv_bm1          # (1, td); zeros off-diag
            var_y = dssy_ref[...] * inv_bm1
            diag_sq = jnp.sum(var_x * var_x) + jnp.sum(var_y * var_y)
            std_sum = (jnp.sum(jnp.maximum(1.0 - jnp.sqrt(var_x + 1e-4), 0.0))
                       + jnp.sum(jnp.maximum(1.0 - jnp.sqrt(var_y + 1e-4), 0.0)))

            # Diagonal tile: sum_offdiag(cov^2) = sum(cov^2) - sum(diag^2),
            # plus the std and MSE terms.  Strict upper tile: its (j, i)
            # mirror contributes identically -> double.
            cov_term = jnp.where(is_diag, frob - diag_sq, 2.0 * frob)
            extra = jnp.where(is_diag,
                              sim_scale * sse_ref[...] + std_scale * std_sum,
                              0.0)
            partial = cov_scale * cov_term + extra    # (1, 1)
            out_ref[...] = partial + jnp.zeros((1, 8, 128), dtype=jnp.float32)

    return kernel


def _min_sublane(dtype):
    return {4: 8, 2: 16, 1: 32}.get(jnp.dtype(dtype).itemsize, 8)


def _pick_batch_block(B, dtype):
    m = _min_sublane(dtype)
    for c in (1024, 512, 256, 128, 64, 32, 16, 8):
        if c % m == 0 and B % c == 0:
            return c
    return B  # the full batch dim is always a legal block


def _pick_feature_block(D, B, dtype):
    itemsize = jnp.dtype(dtype).itemsize
    panel_budget = 40 << 20  # x + y resident panels, double-buffered
    for c in (512, 256, 128):
        if D % c == 0 and 4 * B * c * itemsize <= panel_budget:
            return c
    for c in (512, 256, 128):
        if D % c == 0:
            return c
    return D  # the full feature dim is always a legal block


def vicreg_loss(x, y, sim_coeff=0.5, std_coeff=0.4, cov_coeff=0.1,
                *, block_d=None, block_b=None):
    """VICReg loss. x, y: (B, D). Returns scalar float32 loss."""
    assert x.shape == y.shape and x.ndim == 2
    B, D = x.shape
    assert B >= 2, "VICReg covariance needs at least 2 samples"
    td = block_d if block_d is not None else _pick_feature_block(D, B, x.dtype)
    tb = block_b if block_b is not None else _pick_batch_block(B, x.dtype)
    assert D % td == 0 and B % tb == 0
    ni = D // td
    nb = B // tb

    # Upper-triangular (i <= j) tile pairs, i-major so consecutive grid steps
    # share the same i and the resident i-panels are DMA'd only once per i.
    pairs = [(i, j) for i in range(ni) for j in range(i, ni)]
    nt = len(pairs)
    i_of = jnp.asarray([p[0] for p in pairs], dtype=jnp.int32)
    j_of = jnp.asarray([p[1] for p in pairs], dtype=jnp.int32)

    # Per-feature means (one cheap fused XLA reduction) for on-the-fly
    # centering of the streamed j-side blocks.
    mx = jnp.mean(x.astype(jnp.float32), axis=0, keepdims=True)
    my = jnp.mean(y.astype(jnp.float32), axis=0, keepdims=True)

    mm_dtype = jnp.bfloat16 if x.dtype == jnp.bfloat16 else jnp.float32
    kernel = _vicreg_kernel(sim_coeff, std_coeff, cov_coeff, B, D, tb, td,
                            mm_dtype)

    itemsize = jnp.dtype(x.dtype).itemsize
    vmem_need = (4 * B * td * itemsize      # x / y i-panels, double-buffered
                 + 4 * tb * td * itemsize   # x / y j-blocks, double-buffered
                 + 4 * 8 * td * 4           # means (sublane padded), 2 bufs
                 + 2 * td * td * 4          # S_x / S_y accumulators
                 + 2 * 8 * td * 4           # per-column ssq accumulators
                 + 4 * 8 * 128 * 4)         # partial-loss output blocks
    vmem_limit = int(min(64 << 20, max(32 << 20, int(1.5 * vmem_need) + (1 << 20))))

    partials = pl.pallas_call(
        kernel,
        out_shape=jax.ShapeDtypeStruct((nt, 8, 128), jnp.float32),
        grid_spec=pltpu.PrefetchScalarGridSpec(
            num_scalar_prefetch=2,
            grid=(nt, nb),
            in_specs=[
                # x / y feature-block-i panels: full batch, index independent
                # of b -> stays resident across the whole (j, b) sweep.
                pl.BlockSpec((B, td), lambda t, b, iof, jof: (0, iof[t])),
                pl.BlockSpec((B, td), lambda t, b, iof, jof: (0, iof[t])),
                # x / y feature-block-j batch tiles: streamed over b.
                pl.BlockSpec((tb, td), lambda t, b, iof, jof: (b, jof[t])),
                pl.BlockSpec((tb, td), lambda t, b, iof, jof: (b, jof[t])),
                # per-feature means of the j block (f32).
                pl.BlockSpec((1, td), lambda t, b, iof, jof: (0, jof[t])),
                pl.BlockSpec((1, td), lambda t, b, iof, jof: (0, jof[t])),
            ],
            out_specs=pl.BlockSpec((1, 8, 128), lambda t, b, iof, jof: (t, 0, 0)),
            scratch_shapes=[
                pltpu.VMEM((td, td), jnp.float32),  # S_x accumulator
                pltpu.VMEM((td, td), jnp.float32),  # S_y accumulator
                pltpu.VMEM((1, td), jnp.float32),   # centered ssq x (diag tiles)
                pltpu.VMEM((1, td), jnp.float32),   # centered ssq y (diag tiles)
                pltpu.VMEM((1, 1), jnp.float32),    # sum (x - y)^2 (diag tiles)
            ]),
        compiler_params=pltpu.CompilerParams(
            dimension_semantics=("parallel", "arbitrary"),
            vmem_limit_bytes=vmem_limit),
    )(i_of, j_of, x, y, x, y, mx, my)
    return jnp.sum(partials[:, 0, 0])


def vicreg_loss_ref(x, y, sim_coeff=0.5, std_coeff=0.4, cov_coeff=0.1):
    """Pure-JAX reference mirroring the PyTorch module exactly."""
    x = x.astype(jnp.float32)
    y = y.astype(jnp.float32)
    B, D = x.shape
    repr_loss = jnp.mean((x - y) ** 2)
    xm = x - x.mean(axis=0)
    ym = y - y.mean(axis=0)
    std_x = jnp.sqrt(xm.var(axis=0, ddof=1) + 1e-4)
    std_y = jnp.sqrt(ym.var(axis=0, ddof=1) + 1e-4)
    std_loss = (jnp.mean(jax.nn.relu(1 - std_x)) / 2
                + jnp.mean(jax.nn.relu(1 - std_y)) / 2)
    cov_x = xm.T @ xm / (B - 1)
    cov_y = ym.T @ ym / (B - 1)
    off = ~jnp.eye(D, dtype=bool)
    cov_loss = (jnp.sum(jnp.where(off, cov_x, 0.0) ** 2) / D
                + jnp.sum(jnp.where(off, cov_y, 0.0) ** 2) / D)
    return sim_coeff * repr_loss + std_coeff * std_loss + cov_coeff * cov_loss


if __name__ == "__main__":
    key = jax.random.PRNGKey(0)
    k1, k2, k3, k4, k5, k6 = jax.random.split(key, 6)

    # Case 1: single-tile path (ni = nt = nb = 1, panel == block).
    x1 = jax.random.normal(k1, (8, 32), dtype=jnp.float32)
    y1 = jax.random.normal(k2, (8, 32), dtype=jnp.float32)
    out1 = jax.block_until_ready(vicreg_loss(x1, y1))
    ref1 = jax.block_until_ready(vicreg_loss_ref(x1, y1))
    assert jnp.allclose(out1, ref1, rtol=1e-4, atol=1e-4), (out1, ref1)

    # Case 2: triangular tiled grid (ni=2 -> nt=3 tile pairs, nb=2 batch
    # tiles): exercises the resident-panel dynamic row slice, diagonal vs
    # off-diagonal finalize and the streaming batch reduction.
    x2 = jax.random.normal(k3, (16, 256), dtype=jnp.float32)
    y2 = jax.random.normal(k4, (16, 256), dtype=jnp.float32)
    out2 = jax.block_until_ready(vicreg_loss(x2, y2, block_d=128, block_b=8))
    ref2 = jax.block_until_ready(vicreg_loss_ref(x2, y2))
    assert jnp.allclose(out2, ref2, rtol=1e-4, atol=1e-4), (out2, ref2)

    # Case 3: default block picking with ni=3 (nt=6 tile pairs).
    x3 = jax.random.normal(k5, (64, 384), dtype=jnp.float32)
    y3 = jax.random.normal(k6, (64, 384), dtype=jnp.float32)
    out3 = jax.block_until_ready(vicreg_loss(x3, y3))
    ref3 = jax.block_until_ready(vicreg_loss_ref(x3, y3))
    assert jnp.allclose(out3, ref3, rtol=1e-4, atol=1e-4), (out3, ref3)

    print("KERNEL_OK")
</pallas_src>

<mosaic_0001>
module attributes {stable_mosaic.version = 11 : i64} {
  func.func @kernel(%arg0: i32, %arg1: i32, %arg2: memref<1xi32, #tpu.memory_space<smem>>, %arg3: memref<1xi32, #tpu.memory_space<smem>>, %arg4: memref<8x32xf32, #tpu.memory_space<vmem>>, %arg5: memref<8x32xf32, #tpu.memory_space<vmem>>, %arg6: memref<8x32xf32, #tpu.memory_space<vmem>>, %arg7: memref<8x32xf32, #tpu.memory_space<vmem>>, %arg8: memref<1x32xf32, #tpu.memory_space<vmem>>, %arg9: memref<1x32xf32, #tpu.memory_space<vmem>>, %arg10: memref<1x8x128xf32, #tpu.memory_space<vmem>>, %arg11: memref<32x32xf32, #tpu.memory_space<vmem>>, %arg12: memref<32x32xf32, #tpu.memory_space<vmem>>, %arg13: memref<1x32xf32, #tpu.memory_space<vmem>>, %arg14: memref<1x32xf32, #tpu.memory_space<vmem>>, %arg15: memref<1x1xf32, #tpu.memory_space<vmem>>) attributes {dimension_semantics = [#tpu.dimension_semantics<parallel>, #tpu.dimension_semantics<arbitrary>], iteration_bounds = array<i64: 1, 1>, scalar_prefetch = 2 : i64, scratch_operands = 5 : i64, tpu.core_type = #tpu.core_type<tc>, window_params = [{transform_indices = @transform_0, window_bounds = array<i64: 8, 32>}, {transform_indices = @transform_1, window_bounds = array<i64: 8, 32>}, {transform_indices = @transform_2, window_bounds = array<i64: 8, 32>}, {transform_indices = @transform_3, window_bounds = array<i64: 8, 32>}, {transform_indices = @transform_4, window_bounds = array<i64: 1, 32>}, {transform_indices = @transform_5, window_bounds = array<i64: 1, 32>}, {transform_indices = @transform_6, window_bounds = array<i64: 1, 8, 128>}]} {
    %c0_i32 = arith.constant 0 : i32
    %0 = arith.cmpi eq, %arg1, %c0_i32 : i32
    %1 = arith.index_cast %arg0 : i32 to index
    %2 = memref.load %arg2[%1] : memref<1xi32, #tpu.memory_space<smem>>
    %3 = arith.index_cast %arg0 : i32 to index
    %4 = memref.load %arg3[%3] : memref<1xi32, #tpu.memory_space<smem>>
    %5 = arith.cmpi eq, %2, %4 : i32
    %c0_i32_0 = arith.constant 0 : i32
    %6 = arith.cmpi eq, %arg1, %c0_i32_0 : i32
    %7 = arith.extui %6 : i1 to i32
    %c0_i32_1 = arith.constant 0 : i32
    %8 = arith.cmpi ne, %7, %c0_i32_1 : i32
    scf.if %8 {
      %cst_24 = arith.constant 0.000000e+00 : f32
      %31 = vector.broadcast %cst_24 : f32 to vector<32x32xf32>
      %c0_25 = arith.constant 0 : index
      %c0_26 = arith.constant 0 : index
      %32 = vector.load %arg11[%c0_25, %c0_26] : memref<32x32xf32, #tpu.memory_space<vmem>>, vector<32x32xf32>
      tpu.vector_store %arg11[%c0_25, %c0_26], %31 {strides = array<i32>} : memref<32x32xf32, #tpu.memory_space<vmem>>, vector<32x32xf32>,
      %cst_27 = arith.constant 0.000000e+00 : f32
      %33 = vector.broadcast %cst_27 : f32 to vector<32x32xf32>
      %c0_28 = arith.constant 0 : index
      %c0_29 = arith.constant 0 : index
      %34 = vector.load %arg12[%c0_28, %c0_29] : memref<32x32xf32, #tpu.memory_space<vmem>>, vector<32x32xf32>
      tpu.vector_store %arg12[%c0_28, %c0_29], %33 {strides = array<i32>} : memref<32x32xf32, #tpu.memory_space<vmem>>, vector<32x32xf32>,
      %cst_30 = arith.constant 0.000000e+00 : f32
      %35 = vector.broadcast %cst_30 : f32 to vector<1x32xf32>
      %c0_31 = arith.constant 0 : index
      %c0_32 = arith.constant 0 : index
      %36 = vector.load %arg13[%c0_31, %c0_32] : memref<1x32xf32, #tpu.memory_space<vmem>>, vector<1x32xf32>
      tpu.vector_store %arg13[%c0_31, %c0_32], %35 {strides = array<i32>} : memref<1x32xf32, #tpu.memory_space<vmem>>, vector<1x32xf32>,
      %cst_33 = arith.constant 0.000000e+00 : f32
      %37 = vector.broadcast %cst_33 : f32 to vector<1x32xf32>
      %c0_34 = arith.constant 0 : index
      %c0_35 = arith.constant 0 : index
      %38 = vector.load %arg14[%c0_34, %c0_35] : memref<1x32xf32, #tpu.memory_space<vmem>>, vector<1x32xf32>
      tpu.vector_store %arg14[%c0_34, %c0_35], %37 {strides = array<i32>} : memref<1x32xf32, #tpu.memory_space<vmem>>, vector<1x32xf32>,
      %cst_36 = arith.constant 0.000000e+00 : f32
      %39 = vector.broadcast %cst_36 : f32 to vector<1x1xf32>
      %c0_37 = arith.constant 0 : index
      %c0_38 = arith.constant 0 : index
      %40 = vector.load %arg15[%c0_37, %c0_38] : memref<1x1xf32, #tpu.memory_space<vmem>>, vector<1x1xf32>
      tpu.vector_store %arg15[%c0_37, %c0_38], %39 {strides = array<i32>} : memref<1x1xf32, #tpu.memory_space<vmem>>, vector<1x1xf32>,
    } else {
    }
    %c0 = arith.constant 0 : index
    %c0_2 = arith.constant 0 : index
    %9 = vector.load %arg4[%c0, %c0_2] : memref<8x32xf32, #tpu.memory_space<vmem>>, vector<8x32xf32>
    %c0_3 = arith.constant 0 : index
    %c0_4 = arith.constant 0 : index
    %10 = vector.load %arg5[%c0_3, %c0_4] : memref<8x32xf32, #tpu.memory_space<vmem>>, vector<8x32xf32>
    %c0_5 = arith.constant 0 : index
    %c0_6 = arith.constant 0 : index
    %11 = vector.load %arg6[%c0_5, %c0_6] : memref<8x32xf32, #tpu.memory_space<vmem>>, vector<8x32xf32>
    %c0_7 = arith.constant 0 : index
    %c0_8 = arith.constant 0 : index
    %12 = vector.load %arg7[%c0_7, %c0_8] : memref<8x32xf32, #tpu.memory_space<vmem>>, vector<8x32xf32>
    %c0_9 = arith.constant 0 : index
    %c0_10 = arith.constant 0 : index
    %13 = vector.load %arg8[%c0_9, %c0_10] : memref<1x32xf32, #tpu.memory_space<vmem>>, vector<1x32xf32>
    %14 = vector.broadcast %13 : vector<1x32xf32> to vector<8x32xf32>
    %15 = arith.subf %11, %14 : vector<8x32xf32>
    %c0_11 = arith.constant 0 : index
    %c0_12 = arith.constant 0 : index
    %16 = vector.load %arg9[%c0_11, %c0_12] : memref<1x32xf32, #tpu.memory_space<vmem>>, vector<1x32xf32>
    %17 = vector.broadcast %16 : vector<1x32xf32> to vector<8x32xf32>
    %18 = arith.subf %12, %17 : vector<8x32xf32>
    %c0_13 = arith.constant 0 : index
    %c0_14 = arith.constant 0 : index
    %19 = vector.load %arg11[%c0_13, %c0_14] : memref<32x32xf32, #tpu.memory_space<vmem>>, vector<32x32xf32>
    %cst = arith.constant dense<0.000000e+00> : vector<32x32xf32>
    %20 = tpu.matmul %9, %15, %cst {dimension_numbers = #tpu.dot_dimension_numbers<[0], [0], [1], [1], [0, 1, 1, 1], [], []>} : vector<8x32xf32>, vector<8x32xf32>, vector<32x32xf32> -> vector<32x32xf32>
    %21 = arith.addf %19, %20 : vector<32x32xf32>
    %c0_15 = arith.constant 0 : index
    %c0_16 = arith.constant 0 : index
    %22 = vector.load %arg11[%c0_15, %c0_16] : memref<32x32xf32, #tpu.memory_space<vmem>>, vector<32x32xf32>
    tpu.vector_store %arg11[%c0_15, %c0_16], %21 {strides = array<i32>} : memref<32x32xf32, #tpu.memory_space<vmem>>, vector<32x32xf32>,
    %c0_17 = arith.constant 0 : index
    %c0_18 = arith.constant 0 : index
    %23 = vector.load %arg12[%c0_17, %c0_18] : memref<32x32xf32, #tpu.memory_space<vmem>>, vector<32x32xf32>
    %cst_19 = arith.constant dense<0.000000e+00> : vector<32x32xf32>
    %24 = tpu.matmul %10, %18, %cst_19 {dimension_numbers = #tpu.dot_dimension_numbers<[0], [0], [1], [1], [0, 1, 1, 1], [], []>} : vector<8x32xf32>, vector<8x32xf32>, vector<32x32xf32> -> vector<32x32xf32>
    %25 = arith.addf %23, %24 : vector<32x32xf32>
    %c0_20 = arith.constant 0 : index
    %c0_21 = arith.constant 0 : index
    %26 = vector.load %arg12[%c0_20, %c0_21] : memref<32x32xf32, #tpu.memory_space<vmem>>, vector<32x32xf32>
    tpu.vector_store %arg12[%c0_20, %c0_21], %25 {strides = array<i32>} : memref<32x32xf32, #tpu.memory_space<vmem>>, vector<32x32xf32>,
    %27 = arith.extui %5 : i1 to i32
    %c0_i32_22 = arith.constant 0 : i32
    %28 = arith.cmpi ne, %27, %c0_i32_22 : i32
    scf.if %28 {
      %31 = arith.subf %11, %12 : vector<8x32xf32>
      %c0_24 = arith.constant 0 : index
      %c0_25 = arith.constant 0 : index
      %32 = vector.load %arg15[%c0_24, %c0_25] : memref<1x1xf32, #tpu.memory_space<vmem>>, vector<1x1xf32>
      %33 = arith.mulf %31, %31 : vector<8x32xf32>
      %34 = vector.shape_cast %33 : vector<8x32xf32> to vector<1x8x32xf32>
      %cst_26 = arith.constant dense<0.000000e+00> : vector<1xf32>
      %35 = vector.multi_reduction <add>, %34, %cst_26 [1, 2] : vector<1x8x32xf32> to vector<1xf32>
      %36 = vector.shape_cast %35 : vector<1xf32> to vector<1x1x1xf32>
      %37 = vector.extract %36[0, 0, 0] : f32 from vector<1x1x1xf32>
      %38 = vector.broadcast %37 : f32 to vector<1x1xf32>
      %39 = arith.addf %32, %38 : vector<1x1xf32>
      %c0_27 = arith.constant 0 : index
      %c0_28 = arith.constant 0 : index
      %40 = vector.load %arg15[%c0_27, %c0_28] : memref<1x1xf32, #tpu.memory_space<vmem>>, vector<1x1xf32>
      tpu.vector_store %arg15[%c0_27, %c0_28], %39 {strides = array<i32>} : memref<1x1xf32, #tpu.memory_space<vmem>>, vector<1x1xf32>,
      %c0_29 = arith.constant 0 : index
      %c0_30 = arith.constant 0 : index
      %41 = vector.load %arg13[%c0_29, %c0_30] : memref<1x32xf32, #tpu.memory_space<vmem>>, vector<1x32xf32>
      %42 = arith.mulf %15, %15 : vector<8x32xf32>
      %cst_31 = arith.constant dense<0.000000e+00> : vector<32xf32>
      %43 = vector.multi_reduction <add>, %42, %cst_31 [0] : vector<8x32xf32> to vector<32xf32>
      %44 = vector.shape_cast %43 : vector<32xf32> to vector<1x32xf32>
      %45 = arith.addf %41, %44 : vector<1x32xf32>
      %c0_32 = arith.constant 0 : index
      %c0_33 = arith.constant 0 : index
      %46 = vector.load %arg13[%c0_32, %c0_33] : memref<1x32xf32, #tpu.memory_space<vmem>>, vector<1x32xf32>
      tpu.vector_store %arg13[%c0_32, %c0_33], %45 {strides = array<i32>} : memref<1x32xf32, #tpu.memory_space<vmem>>, vector<1x32xf32>,
      %c0_34 = arith.constant 0 : index
      %c0_35 = arith.constant 0 : index
      %47 = vector.load %arg14[%c0_34, %c0_35] : memref<1x32xf32, #tpu.memory_space<vmem>>, vector<1x32xf32>
      %48 = arith.mulf %18, %18 : vector<8x32xf32>
      %cst_36 = arith.constant dense<0.000000e+00> : vector<32xf32>
      %49 = vector.multi_reduction <add>, %48, %cst_36 [0] : vector<8x32xf32> to vector<32xf32>
      %50 = vector.shape_cast %49 : vector<32xf32> to vector<1x32xf32>
      %51 = arith.addf %47, %50 : vector<1x32xf32>
      %c0_37 = arith.constant 0 : index
      %c0_38 = arith.constant 0 : index
      %52 = vector.load %arg14[%c0_37, %c0_38] : memref<1x32xf32, #tpu.memory_space<vmem>>, vector<1x32xf32>
      tpu.vector_store %arg14[%c0_37, %c0_38], %51 {strides = array<i32>} : memref<1x32xf32, #tpu.memory_space<vmem>>, vector<1x32xf32>,
    } else {
    }
    %29 = arith.extui %0 : i1 to i32
    %c0_i32_23 = arith.constant 0 : i32
    %30 = arith.cmpi ne, %29, %c0_i32_23 : i32
    scf.if %30 {
      %c0_24 = arith.constant 0 : index
      %c0_25 = arith.constant 0 : index
      %31 = vector.load %arg11[%c0_24, %c0_25] : memref<32x32xf32, #tpu.memory_space<vmem>>, vector<32x32xf32>
      %cst_26 = arith.constant 0.142857149 : f32
      %32 = vector.broadcast %cst_26 : f32 to vector<32x32xf32>
      %33 = arith.mulf %31, %32 : vector<32x32xf32>
      %c0_27 = arith.constant 0 : index
      %c0_28 = arith.constant 0 : index
      %34 = vector.load %arg12[%c0_27, %c0_28] : memref<32x32xf32, #tpu.memory_space<vmem>>, vector<32x32xf32>
      %cst_29 = arith.constant 0.142857149 : f32
      %35 = vector.broadcast %cst_29 : f32 to vector<32x32xf32>
      %36 = arith.mulf %34, %35 : vector<32x32xf32>
      %37 = arith.mulf %33, %33 : vector<32x32xf32>
      %38 = vector.shape_cast %37 : vector<32x32xf32> to vector<1x32x32xf32>
      %cst_30 = arith.constant dense<0.000000e+00> : vector<1xf32>
      %39 = vector.multi_reduction <add>, %38, %cst_30 [1, 2] : vector<1x32x32xf32> to vector<1xf32>
      %40 = vector.shape_cast %39 : vector<1xf32> to vector<1x1x1xf32>
      %41 = vector.extract %40[0, 0, 0] : f32 from vector<1x1x1xf32>
      %42 = arith.mulf %36, %36 : vector<32x32xf32>
      %43 = vector.shape_cast %42 : vector<32x32xf32> to vector<1x32x32xf32>
      %cst_31 = arith.constant dense<0.000000e+00> : vector<1xf32>
      %44 = vector.multi_reduction <add>, %43, %cst_31 [1, 2] : vector<1x32x32xf32> to vector<1xf32>
      %45 = vector.shape_cast %44 : vector<1xf32> to vector<1x1x1xf32>
      %46 = vector.extract %45[0, 0, 0] : f32 from vector<1x1x1xf32>
      %47 = arith.addf %41, %46 : f32
      %c0_32 = arith.constant 0 : index
      %c0_33 = arith.constant 0 : index
      %48 = vector.load %arg13[%c0_32, %c0_33] : memref<1x32xf32, #tpu.memory_space<vmem>>, vector<1x32xf32>
      %cst_34 = arith.constant 0.142857149 : f32
      %49 = vector.broadcast %cst_34 : f32 to vector<1x32xf32>
      %50 = arith.mulf %48, %49 : vector<1x32xf32>
      %c0_35 = arith.constant 0 : index
      %c0_36 = arith.constant 0 : index
      %51 = vector.load %arg14[%c0_35, %c0_36] : memref<1x32xf32, #tpu.memory_space<vmem>>, vector<1x32xf32>
      %cst_37 = arith.constant 0.142857149 : f32
      %52 = vector.broadcast %cst_37 : f32 to vector<1x32xf32>
      %53 = arith.mulf %51, %52 : vector<1x32xf32>
      %54 = arith.mulf %50, %50 : vector<1x32xf32>
      %55 = vector.shape_cast %54 : vector<1x32xf32> to vector<1x1x32xf32>
      %cst_38 = arith.constant dense<0.000000e+00> : vector<1xf32>
      %56 = vector.multi_reduction <add>, %55, %cst_38 [1, 2] : vector<1x1x32xf32> to vector<1xf32>
      %57 = vector.shape_cast %56 : vector<1xf32> to vector<1x1x1xf32>
      %58 = vector.extract %57[0, 0, 0] : f32 from vector<1x1x1xf32>
      %59 = arith.mulf %53, %53 : vector<1x32xf32>
      %60 = vector.shape_cast %59 : vector<1x32xf32> to vector<1x1x32xf32>
      %cst_39 = arith.constant dense<0.000000e+00> : vector<1xf32>
      %61 = vector.multi_reduction <add>, %60, %cst_39 [1, 2] : vector<1x1x32xf32> to vector<1xf32>
      %62 = vector.shape_cast %61 : vector<1xf32> to vector<1x1x1xf32>
      %63 = vector.extract %62[0, 0, 0] : f32 from vector<1x1x1xf32>
      %64 = arith.addf %58, %63 : f32
      %cst_40 = arith.constant 9.99999974E-5 : f32
      %65 = vector.broadcast %cst_40 : f32 to vector<1x32xf32>
      %66 = arith.addf %50, %65 : vector<1x32xf32>
      %67 = math.sqrt %66 : vector<1x32xf32>
      %cst_41 = arith.constant 1.000000e+00 : f32
      %68 = vector.broadcast %cst_41 : f32 to vector<1x32xf32>
      %69 = arith.subf %68, %67 : vector<1x32xf32>
      %cst_42 = arith.constant 0.000000e+00 : f32
      %70 = vector.broadcast %cst_42 : f32 to vector<1x32xf32>
      %71 = arith.maximumf %69, %70 : vector<1x32xf32>
      %72 = vector.shape_cast %71 : vector<1x32xf32> to vector<1x1x32xf32>
      %cst_43 = arith.constant dense<0.000000e+00> : vector<1xf32>
      %73 = vector.multi_reduction <add>, %72, %cst_43 [1, 2] : vector<1x1x32xf32> to vector<1xf32>
      %74 = vector.shape_cast %73 : vector<1xf32> to vector<1x1x1xf32>
      %75 = vector.extract %74[0, 0, 0] : f32 from vector<1x1x1xf32>
      %cst_44 = arith.constant 9.99999974E-5 : f32
      %76 = vector.broadcast %cst_44 : f32 to vector<1x32xf32>
      %77 = arith.addf %53, %76 : vector<1x32xf32>
      %78 = math.sqrt %77 : vector<1x32xf32>
      %cst_45 = arith.constant 1.000000e+00 : f32
      %79 = vector.broadcast %cst_45 : f32 to vector<1x32xf32>
      %80 = arith.subf %79, %78 : vector<1x32xf32>
      %cst_46 = arith.constant 0.000000e+00 : f32
      %81 = vector.broadcast %cst_46 : f32 to vector<1x32xf32>
      %82 = arith.maximumf %80, %81 : vector<1x32xf32>
      %83 = vector.shape_cast %82 : vector<1x32xf32> to vector<1x1x32xf32>
      %cst_47 = arith.constant dense<0.000000e+00> : vector<1xf32>
      %84 = vector.multi_reduction <add>, %83, %cst_47 [1, 2] : vector<1x1x32xf32> to vector<1xf32>
      %85 = vector.shape_cast %84 : vector<1xf32> to vector<1x1x1xf32>
      %86 = vector.extract %85[0, 0, 0] : f32 from vector<1x1x1xf32>
      %87 = arith.addf %75, %86 : f32
      %88 = arith.subf %47, %64 : f32
      %cst_48 = arith.constant 2.000000e+00 : f32
      %89 = arith.mulf %cst_48, %47 : f32
      %90 = arith.select %5, %88, %89 : f32
      %c0_49 = arith.constant 0 : index
      %c0_50 = arith.constant 0 : index
      %91 = vector.load %arg15[%c0_49, %c0_50] : memref<1x1xf32, #tpu.memory_space<vmem>>, vector<1x1xf32>
      %cst_51 = arith.constant 0.001953125 : f32
      %92 = vector.broadcast %cst_51 : f32 to vector<1x1xf32>
      %93 = arith.mulf %92, %91 : vector<1x1xf32>
      %cst_52 = arith.constant 6.250000e-03 : f32
      %94 = arith.mulf %cst_52, %87 : f32
      %95 = vector.broadcast %94 : f32 to vector<1x1xf32>
      %96 = arith.addf %93, %95 : vector<1x1xf32>
      %cst_53 = arith.constant 0.000000e+00 : f32
      %97 = vector.broadcast %cst_53 : f32 to vector<1x1xf32>
      %98 = arith.select %5, %96, %97 : vector<1x1xf32>
      %cst_54 = arith.constant 3.125000e-03 : f32
      %99 = arith.mulf %cst_54, %90 : f32
      %100 = vector.broadcast %99 : f32 to vector<1x1xf32>
      %101 = arith.addf %100, %98 : vector<1x1xf32>
      %cst_55 = arith.constant 0.000000e+00 : f32
      %102 = vector.broadcast %cst_55 : f32 to vector<1x8x128xf32>
      %103 = vector.shape_cast %101 : vector<1x1xf32> to vector<1x1x1xf32>
      %104 = vector.broadcast %103 : vector<1x1x1xf32> to vector<1x8x128xf32>
      %105 = arith.addf %104, %102 : vector<1x8x128xf32>
      %c0_56 = arith.constant 0 : index
      %c0_57 = arith.constant 0 : index
      %c0_58 = arith.constant 0 : index
      %106 = vector.load %arg10[%c0_56, %c0_57, %c0_58] : memref<1x8x128xf32, #tpu.memory_space<vmem>>, vector<1x8x128xf32>
      tpu.vector_store %arg10[%c0_56, %c0_57, %c0_58], %105 {strides = array<i32>} : memref<1x8x128xf32, #tpu.memory_space<vmem>>, vector<1x8x128xf32>,
    } else {
    }
    return
  }
  func.func @transform_0(%arg0: i32, %arg1: i32, %arg2: memref<1xi32, #tpu.memory_space<smem>>, %arg3: memref<1xi32, #tpu.memory_space<smem>>) -> (i32, i32) {
    %0 = arith.index_cast %arg0 : i32 to index
    %1 = memref.load %arg2[%0] : memref<1xi32, #tpu.memory_space<smem>>
    %c0_i32 = arith.constant 0 : i32
    %c0_i32_0 = arith.constant 0 : i32
    return %c0_i32, %1 : i32, i32
  }
  func.func @transform_1(%arg0: i32, %arg1: i32, %arg2: memref<1xi32, #tpu.memory_space<smem>>, %arg3: memref<1xi32, #tpu.memory_space<smem>>) -> (i32, i32) {
    %0 = arith.index_cast %arg0 : i32 to index
    %1 = memref.load %arg2[%0] : memref<1xi32, #tpu.memory_space<smem>>
    %c0_i32 = arith.constant 0 : i32
    %c0_i32_0 = arith.constant 0 : i32
    return %c0_i32, %1 : i32, i32
  }
  func.func @transform_2(%arg0: i32, %arg1: i32, %arg2: memref<1xi32, #tpu.memory_space<smem>>, %arg3: memref<1xi32, #tpu.memory_space<smem>>) -> (i32, i32) {
    %0 = arith.index_cast %arg0 : i32 to index
    %1 = memref.load %arg3[%0] : memref<1xi32, #tpu.memory_space<smem>>
    %c0_i32 = arith.constant 0 : i32
    return %arg1, %1 : i32, i32
  }
  func.func @transform_3(%arg0: i32, %arg1: i32, %arg2: memref<1xi32, #tpu.memory_space<smem>>, %arg3: memref<1xi32, #tpu.memory_space<smem>>) -> (i32, i32) {
    %0 = arith.index_cast %arg0 : i32 to index
    %1 = memref.load %arg3[%0] : memref<1xi32, #tpu.memory_space<smem>>
    %c0_i32 = arith.constant 0 : i32
    return %arg1, %1 : i32, i32
  }
  func.func @transform_4(%arg0: i32, %arg1: i32, %arg2: memref<1xi32, #tpu.memory_space<smem>>, %arg3: memref<1xi32, #tpu.memory_space<smem>>) -> (i32, i32) {
    %0 = arith.index_cast %arg0 : i32 to index
    %1 = memref.load %arg3[%0] : memref<1xi32, #tpu.memory_space<smem>>
    %c0_i32 = arith.constant 0 : i32
    %c0_i32_0 = arith.constant 0 : i32
    return %c0_i32, %1 : i32, i32
  }
  func.func @transform_5(%arg0: i32, %arg1: i32, %arg2: memref<1xi32, #tpu.memory_space<smem>>, %arg3: memref<1xi32, #tpu.memory_space<smem>>) -> (i32, i32) {
    %0 = arith.index_cast %arg0 : i32 to index
    %1 = memref.load %arg3[%0] : memref<1xi32, #tpu.memory_space<smem>>
    %c0_i32 = arith.constant 0 : i32
    %c0_i32_0 = arith.constant 0 : i32
    return %c0_i32, %1 : i32, i32
  }
  func.func @transform_6(%arg0: i32, %arg1: i32, %arg2: memref<1xi32, #tpu.memory_space<smem>>, %arg3: memref<1xi32, #tpu.memory_space<smem>>) -> (i32, i32, i32) {
    %c0_i32 = arith.constant 0 : i32
    %c0_i32_0 = arith.constant 0 : i32
    %c0_i32_1 = arith.constant 0 : i32
    return %arg0, %c0_i32, %c0_i32_0 : i32, i32, i32
  }
}

</mosaic_0001>

<llo_original>
// kernel: tpu_custom_call.1
$region0: #{tpu_custom_call.1}
  #allocation0 [shape = 'u32[]', space=smem, size = 0x4, offset = 0x4, fixed_abs, tag = 'smem constant byte address 0x4 - core index']
  #allocation1 [shape = 'u32[144,128]{1,0:T(1,128)}', space=vmem, size = 0x12000, scoped, tag = 'internal scratch']
  #allocation2 [shape = 'f32[32,32]{1,0:T(8,128)}', space=vmem, size = 0x4000, scoped, tag = 'scratch operand']
  #allocation3 [shape = 'f32[32,32]{1,0:T(8,128)}', space=vmem, size = 0x4000, scoped, tag = 'scratch operand']
  #allocation4 [shape = 'f32[1,32]{1,0:T(1,128)}', space=vmem, size = 0x200, scoped, tag = 'scratch operand']
  #allocation5 [shape = 'f32[1,32]{1,0:T(1,128)}', space=vmem, size = 0x200, scoped, tag = 'scratch operand']
  #allocation6 [shape = 'f32[1,1]{1,0:T(1,128)}', space=vmem, size = 0x200, scoped, tag = 'scratch operand']
  #allocation7 [shape = 's32[1]{0}', space=sflag, size = 0x4, scoped, tag = 'scoped memory for tpu_custom_call.1']
  #allocation8 [shape = 's32[1]{0:T(128)S(6)}', space=smem, size = 0x200, scoped, tag = 'prefetched SMEM operand 0']
  #allocation9 [shape = 's32[1]{0:T(128)S(6)}', space=smem, size = 0x200, scoped, tag = 'prefetched SMEM operand 1']
  %s0 = inlined_call_operand.<no memory space> [shape: s32[1], index: 0, kind: input, shape index: {}]
  %s1 = inlined_call_operand.<no memory space> [shape: s32[1], index: 1, kind: input, shape index: {}]
  %s2 = inlined_call_operand.hbm [shape: f32[8,32], index: 2, kind: input, shape index: {}]
  %s3 = inlined_call_operand.vmem [shape: f32[8,32], index: 3, kind: input, shape index: {}]
  %s4 = inlined_call_operand.hbm [shape: f32[8,32], index: 4, kind: input, shape index: {}]
  %s5 = inlined_call_operand.vmem [shape: f32[8,32], index: 5, kind: input, shape index: {}]
  %s6 = inlined_call_operand.vmem [shape: f32[1,32], index: 6, kind: input, shape index: {}]
  %s7 = inlined_call_operand.vmem [shape: f32[1,32], index: 7, kind: input, shape index: {}]
  %s8 = inlined_call_operand.hbm [shape: f32[1,8,128], index: 8, kind: output, shape index: {}]
  %s9 = sld [smem:[#allocation0]]
  $region54: #{tpu_custom_call.1} parent=0
    _
  %s11 = ssub.s32 1, %s9
  %s12 = scalar_select 0, %s11, %s9
  %13 = sst [smem:[#allocation8]] %s0
  %14 = sst [smem:[#allocation9]] %s1
  $region1: #{tpu_custom_call.1} parent=0
    #allocation10 [shape = 'u8[4096]{0}', space=vmem, size = 0x1000, scoped, tag = 'input window, operand 2, single buffered']
    #allocation11 [shape = 's32[1]{0}', space=sflag, size = 0x4, scoped, tag = 'scoped memory for tpu_custom_call.1']
    #allocation12 [shape = 's32[1]{0}', space=sflag, size = 0x4, scoped, tag = 'scoped memory for tpu_custom_call.1']
    #allocation13 [shape = 'u8[4096]{0}', space=vmem, size = 0x1000, scoped, tag = 'input window, operand 4, single buffered']
    #allocation14 [shape = 's32[1]{0}', space=sflag, size = 0x4, scoped, tag = 'scoped memory for tpu_custom_call.1']
    #allocation15 [shape = 'u8[4096]{0}', space=vmem, size = 0x1000, scoped, tag = 'output window, operand 0, single buffered']
    %15 = vsyncpa [#allocation11], 0
    %16 = vsyncpa [#allocation14], 0
    %17 = vsyncpa [#allocation12], 0
    // Predicated region
    $region2: #{tpu_custom_call.1} parent=1 // pred_check
      _
    $region3: #{tpu_custom_call.1} parent=1 // pred_check_branch
      %19 = sbr.rel (0) target = $region5
    $region4: #{tpu_custom_call.1} parent=1 // pred_region
      %s20 = sld [smem:[#allocation8]]
      %s22 = ssub.s32 128, 128
      %23 = vsyncadd [#allocation11], %s22
      %s24 = smul.addr %s20, 128
      %s25 = scalar_lea.hbm %s2, %s24
      %s27 = sshll.u32 [#allocation10], 4
      %s28 = int_to_ptr.vmem [resolvable:$true] %s27
      %30 = dma.hbm_to_vmem [thread:$0]  %s25, 128, %s28, [#allocation11]
    $region5: #{tpu_custom_call.1} parent=1 // pred_fallthru
      _
    // Predicated region
    $region6: #{tpu_custom_call.1} parent=1 // pred_check
      _
    $region7: #{tpu_custom_call.1} parent=1 // pred_check_branch
      %32 = sbr.rel (0) target = $region9
    $region8: #{tpu_custom_call.1} parent=1 // pred_region
      %s33 = sld [smem:[#allocation8]]
      %p34 = scmp.lt.s32.totalorder %s33, 0
      %s35 = scalar_select %p34, %s33, 0
      %s36 = smul.addr %s35, 8
      %s37 = scalar_lea.vmem %s3, %s36
      %s38 = sld [smem:[#allocation8]]
    $region9: #{tpu_custom_call.1} parent=1 // pred_fallthru
      _
    // Predicated region
    $region10: #{tpu_custom_call.1} parent=1 // pred_check
      _
    $region11: #{tpu_custom_call.1} parent=1 // pred_check_branch
      %40 = sbr.rel (0) target = $region13
    $region12: #{tpu_custom_call.1} parent=1 // pred_region
      %s41 = sld [smem:[#allocation9]]
      %s43 = ssub.s32 128, 128
      %44 = vsyncadd [#allocation14], %s43
      %s45 = smul.addr %s41, 128
      %s46 = scalar_lea.hbm %s4, %s45
      %s48 = sshll.u32 [#allocation13], 4
      %s49 = int_to_ptr.vmem [resolvable:$true] %s48
      %51 = dma.hbm_to_vmem [thread:$0]  %s46, 128, %s49, [#allocation14]
    $region13: #{tpu_custom_call.1} parent=1 // pred_fallthru
      _
    // Predicated region
    $region14: #{tpu_custom_call.1} parent=1 // pred_check
      _
    $region15: #{tpu_custom_call.1} parent=1 // pred_check_branch
      %53 = sbr.rel (0) target = $region17
    $region16: #{tpu_custom_call.1} parent=1 // pred_region
      %s54 = sld [smem:[#allocation9]]
      %p55 = scmp.lt.s32.totalorder %s54, 0
      %s56 = scalar_select %p55, %s54, 0
      %s57 = smul.addr %s56, 8
      %s58 = scalar_lea.vmem %s5, %s57
      %s59 = sld [smem:[#allocation9]]
    $region17: #{tpu_custom_call.1} parent=1 // pred_fallthru
      _
    // Predicated region
    $region18: #{tpu_custom_call.1} parent=1 // pred_check
      _
    $region19: #{tpu_custom_call.1} parent=1 // pred_check_branch
      %61 = sbr.rel (0) target = $region21
    $region20: #{tpu_custom_call.1} parent=1 // pred_region
      %s62 = sld [smem:[#allocation9]]
      %p63 = scmp.lt.s32.totalorder %s62, 0
      %s64 = scalar_select %p63, %s62, 0
      %s65 = scalar_lea.vmem %s6, %s64
      %s66 = sld [smem:[#allocation9]]
    $region21: #{tpu_custom_call.1} parent=1 // pred_fallthru
      _
    // Predicated region
    $region22: #{tpu_custom_call.1} parent=1 // pred_check
      _
    $region23: #{tpu_custom_call.1} parent=1 // pred_check_branch
      %68 = sbr.rel (0) target = $region25
    $region24: #{tpu_custom_call.1} parent=1 // pred_region
      %s69 = sld [smem:[#allocation9]]
      %p70 = scmp.lt.s32.totalorder %s69, 0
      %s71 = scalar_select %p70, %s69, 0
      %s72 = scalar_lea.vmem %s7, %s71
      %s73 = sld [smem:[#allocation9]]
    $region25: #{tpu_custom_call.1} parent=1 // pred_fallthru
      _
    // Predicated region
    $region26: #{tpu_custom_call.1} parent=1 // pred_check
      _
    $region27: #{tpu_custom_call.1} parent=1 // pred_check_branch
      %75 = sbr.rel (0) target = $region29
    $region28: #{tpu_custom_call.1} parent=1 // pred_region
      %76 = dma.done [#allocation11], 128
    $region29: #{tpu_custom_call.1} parent=1 // pred_fallthru
      _
    // Predicated region
    $region30: #{tpu_custom_call.1} parent=1 // pred_check
      _
    $region31: #{tpu_custom_call.1} parent=1 // pred_check_branch
      %78 = sbr.rel (0) target = $region33
    $region32: #{tpu_custom_call.1} parent=1 // pred_region
      %79 = dma.done [#allocation14], 128
    $region33: #{tpu_custom_call.1} parent=1 // pred_fallthru
      _
    %s80 = sld [smem:[#allocation8]]
    %p81 = scmp.lt.s32.totalorder %s80, 0
    %s82 = scalar_select %p81, %s80, 0
    %s83 = smul.addr %s82, 8
    %s84 = scalar_lea.vmem %s3, %s83
    %s85 = sld [smem:[#allocation9]]
    %p86 = scmp.lt.s32.totalorder %s85, 0
    %s87 = scalar_select %p86, %s85, 0
    %s88 = smul.addr %s87, 8
    %s89 = scalar_lea.vmem %s5, %s88
    %s90 = sld [smem:[#allocation9]]
    %p91 = scmp.lt.s32.totalorder %s90, 0
    %s92 = scalar_select %p91, %s90, 0
    %s93 = scalar_lea.vmem %s6, %s92
    %s94 = sld [smem:[#allocation9]]
    %p95 = scmp.lt.s32.totalorder %s94, 0
    %s96 = scalar_select %p95, %s94, 0
    %s97 = scalar_lea.vmem %s7, %s96
    %s98 = sld [smem:[#allocation8]]
    %s99 = sld [smem:[#allocation8]]
    %p100 = scmp.lt.s32.totalorder %s99, 0
    %s101 = scalar_select %p100, %s99, 0
    %s102 = smul.addr %s101, 8
    %s103 = scalar_lea.vmem %s3, %s102
    %s104 = sld [smem:[#allocation8]]
    %s105 = sld [smem:[#allocation9]]
    %s106 = sld [smem:[#allocation9]]
    %p107 = scmp.lt.s32.totalorder %s106, 0
    %s108 = scalar_select %p107, %s106, 0
    %s109 = smul.addr %s108, 8
    %s110 = scalar_lea.vmem %s5, %s109
    %s111 = sld [smem:[#allocation9]]
    %s112 = sld [smem:[#allocation9]]
    %p113 = scmp.lt.s32.totalorder %s112, 0
    %s114 = scalar_select %p113, %s112, 0
    %s115 = scalar_lea.vmem %s6, %s114
    %s116 = sld [smem:[#allocation9]]
    %s117 = sld [smem:[#allocation9]]
    %p118 = scmp.lt.s32.totalorder %s117, 0
    %s119 = scalar_select %p118, %s117, 0
    %s120 = scalar_lea.vmem %s7, %s119
    %s121 = sld [smem:[#allocation9]]
    %p122 = scmp.eq.s32.totalorder 0, 0
    %s123 = sld [smem:[#allocation8]]
    %s124 = sld [smem:[#allocation9]]
    %p125 = scmp.eq.s32.totalorder %s123, %s124
    // Predicated region
    $region34: #{tpu_custom_call.1} parent=1 // pred_check
      %p126 = pneg %p122
    $region35: #{tpu_custom_call.1} parent=1 // pred_check_branch
      %128 = sbr.rel (%p126) target = $region37
    $region36: #{tpu_custom_call.1} parent=1 // pred_region
      %vm129 = vcmask 261120
      %130 = vst.msk [vmem:[#allocation2] sm:$0xff] %vm129, 0.0
      %131 = vst.msk [vmem:[#allocation2 + $0x8] sm:$0xff] %vm129, 0.0
      %132 = vst.msk [vmem:[#allocation2 + $0x10] sm:$0xff] %vm129, 0.0
      %133 = vst.msk [vmem:[#allocation2 + $0x18] sm:$0xff] %vm129, 0.0
      %134 = vst.msk [vmem:[#allocation3] sm:$0xff] %vm129, 0.0
      %135 = vst.msk [vmem:[#allocation3 + $0x8] sm:$0xff] %vm129, 0.0
      %136 = vst.msk [vmem:[#allocation3 + $0x10] sm:$0xff] %vm129, 0.0
      %137 = vst.msk [vmem:[#allocation3 + $0x18] sm:$0xff] %vm129, 0.0
      %vm138 = vcmask 253952
      %139 = vst.msk [vmem:[#allocation4] sm:$0x1] %vm138, 0.0
      %140 = vst.msk [vmem:[#allocation5] sm:$0x1] %vm138, 0.0
      %vm141 = vcmask 0
      %142 = vst.msk [vmem:[#allocation6] sm:$0x1] %vm141, 0.0
    $region37: #{tpu_custom_call.1} parent=1 // pred_fallthru
      _
    %v143 = vld [vmem:[#allocation10] sm:$0xff]
    %v144 = vld [vmem:[%s103] sm:$0xff]
    %v145 = vld [vmem:[#allocation13] sm:$0xff]
    %v146 = vld [vmem:[%s110] sm:$0xff]
    %v147 = vld [vmem:[%s115] sm:$0x1]
    %v149 = vlaneseq
    %v150 = vshrl.u32 %v149, 7
    %v151 = vsub.s32 0, %v150
    %v152 = vrot.slane %v147, %v151
    %v154 = vsub.f32 %v145, %v152
    %v155 = vld [vmem:[%s120] sm:$0x1]
    %v157 = vlaneseq
    %v158 = vshrl.u32 %v157, 7
    %v159 = vsub.s32 0, %v158
    %v160 = vrot.slane %v155, %v159
    %v162 = vsub.f32 %v146, %v160
    %v163 = vld [vmem:[#allocation2] sm:$0xff]
    %v164 = vld [vmem:[#allocation2 + $0x8] sm:$0xff]
    %v165 = vld [vmem:[#allocation2 + $0x10] sm:$0xff]
    %v166 = vld [vmem:[#allocation2 + $0x18] sm:$0xff]
    %167 = vxpose.xlu0.b32.start [1/16] %v143, 128
    %168 = vxpose.xlu0.b32.cont [2/16] 0.0, 128
    %169 = vxpose.xlu0.b32.cont [3/16] 0.0, 128
    %170 = vxpose.xlu0.b32.cont [4/16] 0.0, 128
    %171 = vxpose.xlu0.b32.cont [5/16] 0.0, 128
    %172 = vxpose.xlu0.b32.cont [6/16] 0.0, 128
    %173 = vxpose.xlu0.b32.cont [7/16] 0.0, 128
    %174 = vxpose.xlu0.b32.cont [8/16] 0.0, 128
    %175 = vxpose.xlu0.b32.cont [9/16] 0.0, 128
    %176 = vxpose.xlu0.b32.cont [10/16] 0.0, 128
    %177 = vxpose.xlu0.b32.cont [11/16] 0.0, 128
    %178 = vxpose.xlu0.b32.cont [12/16] 0.0, 128
    %179 = vxpose.xlu0.b32.cont [13/16] 0.0, 128
    %180 = vxpose.xlu0.b32.cont [14/16] 0.0, 128
    %181 = vxpose.xlu0.b32.cont [15/16] 0.0, 128
    %182 = vxpose.xlu0.b32.end [16/16] 0.0, 128
    %v183 = vpop.trf.xlu0
    %v184 = vpop.trf.xlu0
    %v185 = vpop.trf.xlu0
    %v186 = vpop.trf.xlu0
    %v187 = vpop.trf.xlu0
    %v188 = vpop.trf.xlu0
    %v189 = vpop.trf.xlu0
    %v190 = vpop.trf.xlu0
    %v191 = vpop.trf.xlu0
    %v192 = vpop.trf.xlu0
    %v193 = vpop.trf.xlu0
    %v194 = vpop.trf.xlu0
    %v195 = vpop.trf.xlu0
    %v196 = vpop.trf.xlu0
    %v197 = vpop.trf.xlu0
    %v198 = vpop.trf.xlu0
    %vm199 = vcmask 64512
    %v201 = vsel %vm199, %v183, 0
    %v204 = vsel %vm199, %v184, 0
    %v207 = vsel %vm199, %v185, 0
    %v210 = vsel %vm199, %v186, 0
    %212 = vmatprep.subr.mxu0 0.0
    %213 = vmatpush1.msra.mxu0 %v154
    %214 = vmatprep.subr.mxu0 0.0
    %215 = vmatpush1.msra.mxu0 0.0
    %216 = vmatprep.subr.mxu0 0.0
    %217 = vmatpush1.msra.mxu0 0.0
    %218 = vmatprep.subr.mxu0 0.0
    %219 = vmatpush1.msra.mxu0 0.0
    %220 = vmatprep.subr.mxu0 0.0
    %221 = vmatpush1.msra.mxu0 0.0
    %222 = vmatprep.subr.mxu0 0.0
    %223 = vmatpush1.msra.mxu0 0.0
    %224 = vmatprep.subr.mxu0 0.0
    %225 = vmatpush1.msra.mxu0 0.0
    %226 = vmatprep.subr.mxu0 0.0
    %227 = vmatpush1.msra.mxu0 0.0
    %228 = vmatprep.subr.mxu0 0.0
    %229 = vmatpush1.msra.mxu0 0.0
    %230 = vmatprep.subr.mxu0 0.0
    %231 = vmatpush1.msra.mxu0 0.0
    %232 = vmatprep.subr.mxu0 0.0
    %233 = vmatpush1.msra.mxu0 0.0
    %234 = vmatprep.subr.mxu0 0.0
    %235 = vmatpush1.msra.mxu0 0.0
    %236 = vmatprep.subr.mxu0 0.0
    %237 = vmatpush1.msra.mxu0 0.0
    %238 = vmatprep.subr.mxu0 0.0
    %239 = vmatpush1.msra.mxu0 0.0
    %240 = vmatprep.subr.mxu0 0.0
    %241 = vmatpush1.msra.mxu0 0.0
    %242 = vmatprep.subr.mxu0 0.0
    %243 = vmatpush1.msra.mxu0 0.0
    %244 = vmatprep.subr.mxu0 0.0
    %245 = vmatpush1.msra.mxu0 0.0
    %246 = vmatprep.subr.mxu0 0.0
    %247 = vmatpush1.msra.mxu0 0.0
    %248 = vmatprep.subr.mxu0 0.0
    %249 = vmatpush1.msra.mxu0 0.0
    %250 = vmatprep.subr.mxu0 0.0
    %251 = vmatpush1.msra.mxu0 0.0
    %252 = vmatprep.subr.mxu0 0.0
    %253 = vmatpush1.msra.mxu0 0.0
    %254 = vmatprep.subr.mxu0 0.0
    %255 = vmatpush1.msra.mxu0 0.0
    %256 = vmatprep.subr.mxu0 0.0
    %257 = vmatpush1.msra.mxu0 0.0
    %258 = vmatprep.subr.mxu0 0.0
    %259 = vmatpush1.msra.mxu0 0.0
    %260 = vmatprep.subr.mxu0 0.0
    %261 = vmatpush1.msra.mxu0 0.0
    %262 = vmatprep.subr.mxu0 0.0
    %263 = vmatpush1.msra.mxu0 0.0
    %264 = vmatprep.subr.mxu0 0.0
    %265 = vmatpush1.msra.mxu0 0.0
    %266 = vmatprep.subr.mxu0 0.0
    %267 = vmatpush1.msra.mxu0 0.0
    %268 = vmatprep.subr.mxu0 0.0
    %269 = vmatpush1.msra.mxu0 0.0
    %270 = vmatprep.subr.mxu0 0.0
    %271 = vmatpush1.msra.mxu0 0.0
    %272 = vmatprep.subr.mxu0 0.0
    %273 = vmatpush1.msra.mxu0 0.0
    %274 = vmatprep.subr.mxu0 0.0
    %275 = vmatpush1.msra.mxu0 0.0
    %276 = vmatprep.mubr.f32.mxu0 0.0
    %277 = vmatmul.mubr.f32.gmra.mrb[0].mxu0 %v201
    %v278 = vpop.f32.mrb[0].mxu0
    %v279 = vadd.f32 0.0, %v278
    %v280 = vpop.f32.mrb[0].mxu0
    %281 = vmatprep.mubr.f32.mxu0 0.0
    %282 = vmatmul.mubr.f32.gmra.mrb[0].mxu0 %v204
    %v283 = vpop.f32.mrb[0].mxu0
    %v284 = vadd.f32 0.0, %v283
    %v285 = vpop.f32.mrb[0].mxu0
    %286 = vmatprep.mubr.f32.mxu0 0.0
    %287 = vmatmul.mubr.f32.gmra.mrb[0].mxu0 %v207
    %v288 = vpop.f32.mrb[0].mxu0
    %v289 = vadd.f32 0.0, %v288
    %v290 = vpop.f32.mrb[0].mxu0
    %291 = vmatprep.mubr.f32.mxu0 0.0
    %292 = vmatmul.mubr.f32.gmra.mrb[0].mxu0 %v210
    %v293 = vpop.f32.mrb[0].mxu0
    %v294 = vadd.f32 0.0, %v293
    %v295 = vpop.f32.mrb[0].mxu0
    %296 = vdwg.mxu0
    %v297 = vadd.f32 %v163, %v279
    %v298 = vadd.f32 %v164, %v284
    %v299 = vadd.f32 %v165, %v289
    %v300 = vadd.f32 %v166, %v294
    %vm301 = vcmask 261120
    %302 = vst.msk [vmem:[#allocation2] sm:$0xff] %vm301, %v297
    %303 = vst.msk [vmem:[#allocation2 + $0x8] sm:$0xff] %vm301, %v298
    %304 = vst.msk [vmem:[#allocation2 + $0x10] sm:$0xff] %vm301, %v299
    %305 = vst.msk [vmem:[#allocation2 + $0x18] sm:$0xff] %vm301, %v300
    %v306 = vld [vmem:[#allocation3] sm:$0xff]
    %v307 = vld [vmem:[#allocation3 + $0x8] sm:$0xff]
    %v308 = vld [vmem:[#allocation3 + $0x10] sm:$0xff]
    %v309 = vld [vmem:[#allocation3 + $0x18] sm:$0xff]
    %310 = vxpose.xlu0.b32.start [1/16] %v144, 128
    %311 = vxpose.xlu0.b32.cont [2/16] 0.0, 128
    %312 = vxpose.xlu0.b32.cont [3/16] 0.0, 128
    %313 = vxpose.xlu0.b32.cont [4/16] 0.0, 128
    %314 = vxpose.xlu0.b32.cont [5/16] 0.0, 128
    %315 = vxpose.xlu0.b32.cont [6/16] 0.0, 128
    %316 = vxpose.xlu0.b32.cont [7/16] 0.0, 128
    %317 = vxpose.xlu0.b32.cont [8/16] 0.0, 128
    %318 = vxpose.xlu0.b32.cont [9/16] 0.0, 128
    %319 = vxpose.xlu0.b32.cont [10/16] 0.0, 128
    %320 = vxpose.xlu0.b32.cont [11/16] 0.0, 128
    %321 = vxpose.xlu0.b32.cont [12/16] 0.0, 128
    %322 = vxpose.xlu0.b32.cont [13/16] 0.0, 128
    %323 = vxpose.xlu0.b32.cont [14/16] 0.0, 128
    %324 = vxpose.xlu0.b32.cont [15/16] 0.0, 128
    %325 = vxpose.xlu0.b32.end [16/16] 0.0, 128
    %v326 = vpop.trf.xlu0
    %v327 = vpop.trf.xlu0
    %v328 = vpop.trf.xlu0
    %v329 = vpop.trf.xlu0
    %v330 = vpop.trf.xlu0
    %v331 = vpop.trf.xlu0
    %v332 = vpop.trf.xlu0
    %v333 = vpop.trf.xlu0
    %v334 = vpop.trf.xlu0
    %v335 = vpop.trf.xlu0
    %v336 = vpop.trf.xlu0
    %v337 = vpop.trf.xlu0
    %v338 = vpop.trf.xlu0
    %v339 = vpop.trf.xlu0
    %v340 = vpop.trf.xlu0
    %v341 = vpop.trf.xlu0
    %v343 = vsel %vm199, %v326, 0
    %v346 = vsel %vm199, %v327, 0
    %v349 = vsel %vm199, %v328, 0
    %v352 = vsel %vm199, %v329, 0
    %354 = vmatprep.subr.mxu0 0.0
    %355 = vmatpush1.msra.mxu0 %v162
    %356 = vmatprep.subr.mxu0 0.0
    %357 = vmatpush1.msra.mxu0 0.0
    %358 = vmatprep.subr.mxu0 0.0
    %359 = vmatpush1.msra.mxu0 0.0
    %360 = vmatprep.subr.mxu0 0.0
    %361 = vmatpush1.msra.mxu0 0.0
    %362 = vmatprep.subr.mxu0 0.0
    %363 = vmatpush1.msra.mxu0 0.0
    %364 = vmatprep.subr.mxu0 0.0
    %365 = vmatpush1.msra.mxu0 0.0
    %366 = vmatprep.subr.mxu0 0.0
    %367 = vmatpush1.msra.mxu0 0.0
    %368 = vmatprep.subr.mxu0 0.0
    %369 = vmatpush1.msra.mxu0 0.0
    %370 = vmatprep.subr.mxu0 0.0
    %371 = vmatpush1.msra.mxu0 0.0
    %372 = vmatprep.subr.mxu0 0.0
    %373 = vmatpush1.msra.mxu0 0.0
    %374 = vmatprep.subr.mxu0 0.0
    %375 = vmatpush1.msra.mxu0 0.0
    %376 = vmatprep.subr.mxu0 0.0
    %377 = vmatpush1.msra.mxu0 0.0
    %378 = vmatprep.subr.mxu0 0.0
    %379 = vmatpush1.msra.mxu0 0.0
    %380 = vmatprep.subr.mxu0 0.0
    %381 = vmatpush1.msra.mxu0 0.0
    %382 = vmatprep.subr.mxu0 0.0
    %383 = vmatpush1.msra.mxu0 0.0
    %384 = vmatprep.subr.mxu0 0.0
    %385 = vmatpush1.msra.mxu0 0.0
    %386 = vmatprep.subr.mxu0 0.0
    %387 = vmatpush1.msra.mxu0 0.0
    %388 = vmatprep.subr.mxu0 0.0
    %389 = vmatpush1.msra.mxu0 0.0
    %390 = vmatprep.subr.mxu0 0.0
    %391 = vmatpush1.msra.mxu0 0.0
    %392 = vmatprep.subr.mxu0 0.0
    %393 = vmatpush1.msra.mxu0 0.0
    %394 = vmatprep.subr.mxu0 0.0
    %395 = vmatpush1.msra.mxu0 0.0
    %396 = vmatprep.subr.mxu0 0.0
    %397 = vmatpush1.msra.mxu0 0.0
    %398 = vmatprep.subr.mxu0 0.0
    %399 = vmatpush1.msra.mxu0 0.0
    %400 = vmatprep.subr.mxu0 0.0
    %401 = vmatpush1.msra.mxu0 0.0
    %402 = vmatprep.subr.mxu0 0.0
    %403 = vmatpush1.msra.mxu0 0.0
    %404 = vmatprep.subr.mxu0 0.0
    %405 = vmatpush1.msra.mxu0 0.0
    %406 = vmatprep.subr.mxu0 0.0
    %407 = vmatpush1.msra.mxu0 0.0
    %408 = vmatprep.subr.mxu0 0.0
    %409 = vmatpush1.msra.mxu0 0.0
    %410 = vmatprep.subr.mxu0 0.0
    %411 = vmatpush1.msra.mxu0 0.0
    %412 = vmatprep.subr.mxu0 0.0
    %413 = vmatpush1.msra.mxu0 0.0
    %414 = vmatprep.subr.mxu0 0.0
    %415 = vmatpush1.msra.mxu0 0.0
    %416 = vmatprep.subr.mxu0 0.0
    %417 = vmatpush1.msra.mxu0 0.0
    %418 = vmatprep.mubr.f32.mxu0 0.0
    %419 = vmatmul.mubr.f32.gmra.mrb[0].mxu0 %v343
    %v420 = vpop.f32.mrb[0].mxu0
    %v421 = vadd.f32 0.0, %v420
    %v422 = vpop.f32.mrb[0].mxu0
    %423 = vmatprep.mubr.f32.mxu0 0.0
    %424 = vmatmul.mubr.f32.gmra.mrb[0].mxu0 %v346
    %v425 = vpop.f32.mrb[0].mxu0
    %v426 = vadd.f32 0.0, %v425
    %v427 = vpop.f32.mrb[0].mxu0
    %428 = vmatprep.mubr.f32.mxu0 0.0
    %429 = vmatmul.mubr.f32.gmra.mrb[0].mxu0 %v349
    %v430 = vpop.f32.mrb[0].mxu0
    %v431 = vadd.f32 0.0, %v430
    %v432 = vpop.f32.mrb[0].mxu0
    %433 = vmatprep.mubr.f32.mxu0 0.0
    %434 = vmatmul.mubr.f32.gmra.mrb[0].mxu0 %v352
    %v435 = vpop.f32.mrb[0].mxu0
    %v436 = vadd.f32 0.0, %v435
    %v437 = vpop.f32.mrb[0].mxu0
    %438 = vdwg.mxu0
    %v439 = vadd.f32 %v306, %v421
    %v440 = vadd.f32 %v307, %v426
    %v441 = vadd.f32 %v308, %v431
    %v442 = vadd.f32 %v309, %v436
    %443 = vst.msk [vmem:[#allocation3] sm:$0xff] %vm301, %v439
    %444 = vst.msk [vmem:[#allocation3 + $0x8] sm:$0xff] %vm301, %v440
    %445 = vst.msk [vmem:[#allocation3 + $0x10] sm:$0xff] %vm301, %v441
    %446 = vst.msk [vmem:[#allocation3 + $0x18] sm:$0xff] %vm301, %v442
    // Predicated region
    $region38: #{tpu_custom_call.1} parent=1 // pred_check
      %p447 = pneg %p125
    $region39: #{tpu_custom_call.1} parent=1 // pred_check_branch
      %449 = sbr.rel (%p447) target = $region41
    $region40: #{tpu_custom_call.1} parent=1 // pred_region
      %v450 = vsub.f32 %v145, %v146
      %v451 = vld [vmem:[#allocation6] sm:$0x1]
      %v452 = vmul.f32 %v450, %v450
      %v453 = vsel %vm301, %v452, 0.0
      %454 = vadd.xlane.f32.xlu0 %v453
      %v455 = vpop.xlane.xlu0 %454
      %v456 = vrot.slane %v455, 4
      %v457 = vadd.f32 %v455, %v456
      %v458 = vrot.slane %v457, 2
      %v459 = vadd.f32 %v457, %v458
      %v460 = vrot.slane %v459, 1
      %v461 = vadd.f32 %v459, %v460
      %s462 = vtos %v461
      %v463 = vstv %s462
      %v464 = vadd.f32 %v451, %v463
      %vm465 = vcmask 0
      %466 = vst.msk [vmem:[#allocation6] sm:$0x1] %vm465, %v464
      %v467 = vld [vmem:[#allocation4] sm:$0x1]
      %v468 = vmul.f32 %v154, %v154
      %v469 = vsel %vm301, %v468, 0.0
      %v470 = vrot.slane %v469, 4
      %v471 = vadd.f32 %v469, %v470
      %v472 = vrot.slane %v471, 2
      %v473 = vadd.f32 %v471, %v472
      %v474 = vrot.slane %v473, 1
      %v475 = vadd.f32 %v473, %v474
      %v476 = vadd.f32 %v467, %v475
      %vm477 = vcmask 253952
      %478 = vst.msk [vmem:[#allocation4] sm:$0x1] %vm477, %v476
      %v479 = vld [vmem:[#allocation5] sm:$0x1]
      %v480 = vmul.f32 %v162, %v162
      %v481 = vsel %vm301, %v480, 0.0
      %v482 = vrot.slane %v481, 4
      %v483 = vadd.f32 %v481, %v482
      %v484 = vrot.slane %v483, 2
      %v485 = vadd.f32 %v483, %v484
      %v486 = vrot.slane %v485, 1
      %v487 = vadd.f32 %v485, %v486
      %v488 = vadd.f32 %v479, %v487
      %489 = vst.msk [vmem:[#allocation5] sm:$0x1] %vm477, %v488
    $region41: #{tpu_custom_call.1} parent=1 // pred_fallthru
      _
    // Predicated region
    $region42: #{tpu_custom_call.1} parent=1 // pred_check
      %p490 = pneg %p122
    $region43: #{tpu_custom_call.1} parent=1 // pred_check_branch
      %492 = sbr.rel (%p490) target = $region45
    $region44: #{tpu_custom_call.1} parent=1 // pred_region
      %v493 = vld [vmem:[#allocation2] sm:$0xff]
      %v494 = vld [vmem:[#allocation2 + $0x8] sm:$0xff]
      %v495 = vld [vmem:[#allocation2 + $0x10] sm:$0xff]
      %v496 = vld [vmem:[#allocation2 + $0x18] sm:$0xff]
      %v497 = vmul.f32 %v493, 0.14285715
      %v498 = vmul.f32 %v494, 0.14285715
      %v499 = vmul.f32 %v495, 0.14285715
      %v500 = vmul.f32 %v496, 0.14285715
      %v501 = vld [vmem:[#allocation3] sm:$0xff]
      %v502 = vld [vmem:[#allocation3 + $0x8] sm:$0xff]
      %v503 = vld [vmem:[#allocation3 + $0x10] sm:$0xff]
      %v504 = vld [vmem:[#allocation3 + $0x18] sm:$0xff]
      %v505 = vmul.f32 %v501, 0.14285715
      %v506 = vmul.f32 %v502, 0.14285715
      %v507 = vmul.f32 %v503, 0.14285715
      %v508 = vmul.f32 %v504, 0.14285715
      %v509 = vmul.f32 %v497, %v497
      %v510 = vmul.f32 %v498, %v498
      %v511 = vmul.f32 %v499, %v499
      %v512 = vmul.f32 %v500, %v500
      %v513 = vsel %vm301, %v509, 0.0
      %v514 = vsel %vm301, %v510, 0.0
      %v515 = vadd.f32 %v513, %v514
      %v516 = vsel %vm301, %v511, 0.0
      %v517 = vadd.f32 %v515, %v516
      %v518 = vsel %vm301, %v512, 0.0
      %v519 = vadd.f32 %v517, %v518
      %520 = vadd.xlane.f32.xlu0 %v519
      %v521 = vpop.xlane.xlu0 %520
      %v522 = vrot.slane %v521, 4
      %v523 = vadd.f32 %v521, %v522
      %v524 = vrot.slane %v523, 2
      %v525 = vadd.f32 %v523, %v524
      %v526 = vrot.slane %v525, 1
      %v527 = vadd.f32 %v525, %v526
      %s528 = vtos %v527
      %v529 = vmul.f32 %v505, %v505
      %v530 = vmul.f32 %v506, %v506
      %v531 = vmul.f32 %v507, %v507
      %v532 = vmul.f32 %v508, %v508
      %v533 = vsel %vm301, %v529, 0.0
      %v534 = vsel %vm301, %v530, 0.0
      %v535 = vadd.f32 %v533, %v534
      %v536 = vsel %vm301, %v531, 0.0
      %v537 = vadd.f32 %v535, %v536
      %v538 = vsel %vm301, %v532, 0.0
      %v539 = vadd.f32 %v537, %v538
      %540 = vadd.xlane.f32.xlu0 %v539
      %v541 = vpop.xlane.xlu0 %540
      %v542 = vrot.slane %v541, 4
      %v543 = vadd.f32 %v541, %v542
      %v544 = vrot.slane %v543, 2
      %v545 = vadd.f32 %v543, %v544
      %v546 = vrot.slane %v545, 1
      %v547 = vadd.f32 %v545, %v546
      %s548 = vtos %v547
      %s549 = sadd.f32 %s528, %s548
      %v550 = vld [vmem:[#allocation4] sm:$0x1]
      %v551 = vmul.f32 %v550, 0.14285715
      %v552 = vld [vmem:[#allocation5] sm:$0x1]
      %v553 = vmul.f32 %v552, 0.14285715
      %v554 = vmul.f32 %v551, %v551
      %vm555 = vcmask 253952
      %v556 = vsel %vm555, %v554, 0.0
      %557 = vadd.xlane.f32.xlu0 %v556
      %v558 = vpop.xlane.xlu0 %557
      %v559 = vrot.slane %v558, 4
      %v560 = vadd.f32 %v558, %v559
      %v561 = vrot.slane %v560, 2
      %v562 = vadd.f32 %v560, %v561
      %v563 = vrot.slane %v562, 1
      %v564 = vadd.f32 %v562, %v563
      %s565 = vtos %v564
      %v566 = vmul.f32 %v553, %v553
      %v567 = vsel %vm555, %v566, 0.0
      %568 = vadd.xlane.f32.xlu0 %v567
      %v569 = vpop.xlane.xlu0 %568
      %v570 = vrot.slane %v569, 4
      %v571 = vadd.f32 %v569, %v570
      %v572 = vrot.slane %v571, 2
      %v573 = vadd.f32 %v571, %v572
      %v574 = vrot.slane %v573, 1
      %v575 = vadd.f32 %v573, %v574
      %s576 = vtos %v575
      %s577 = sadd.f32 %s565, %s576
      %v578 = vadd.f32 %v551, 0.0001
      %v579 = vrsqrt.pop %v578
      %v580 = vmul.f32 %v578, %v579
      %vm581 = vcmp.eq.f32.partialorder %v578, inf
      %v582 = vsel %vm581, %v578, %v580
      %vm583 = vcmp.eq.f32.partialorder %v578, 0.0
      %v584 = vand.u32 %v578, 2147483648
      %v585 = vsel %vm583, %v584, %v582
      %v586 = vsub.f32 1.0, %v585
      %v587 = vmax.f32 %v586, 0.0
      %v588 = vsel %vm555, %v587, 0.0
      %589 = vadd.xlane.f32.xlu0 %v588
      %v590 = vpop.xlane.xlu0 %589
      %v591 = vrot.slane %v590, 4
      %v592 = vadd.f32 %v590, %v591
      %v593 = vrot.slane %v592, 2
      %v594 = vadd.f32 %v592, %v593
      %v595 = vrot.slane %v594, 1
      %v596 = vadd.f32 %v594, %v595
      %s597 = vtos %v596
      %v598 = vadd.f32 %v553, 0.0001
      %v599 = vrsqrt.pop %v598
      %v600 = vmul.f32 %v598, %v599
      %vm601 = vcmp.eq.f32.partialorder %v598, inf
      %v602 = vsel %vm601, %v598, %v600
      %vm603 = vcmp.eq.f32.partialorder %v598, 0.0
      %v604 = vand.u32 %v598, 2147483648
      %v605 = vsel %vm603, %v604, %v602
      %v606 = vsub.f32 1.0, %v605
      %v607 = vmax.f32 %v606, 0.0
      %v608 = vsel %vm555, %v607, 0.0
      %609 = vadd.xlane.f32.xlu0 %v608
      %v610 = vpop.xlane.xlu0 %609
      %v611 = vrot.slane %v610, 4
      %v612 = vadd.f32 %v610, %v611
      %v613 = vrot.slane %v612, 2
      %v614 = vadd.f32 %v612, %v613
      %v615 = vrot.slane %v614, 1
      %v616 = vadd.f32 %v614, %v615
      %s617 = vtos %v616
      %s618 = sadd.f32 %s597, %s617
      %s619 = ssub.f32 %s549, %s577
      %s620 = smul.f32 %s549, 2.0
      %s621 = scalar_select %p125, %s619, %s620
      %v622 = vld [vmem:[#allocation6] sm:$0x1]
      %v623 = vmul.f32 %v622, 0.001953125
      %s624 = smul.f32 %s618, 0.00625
      %v625 = vstv %s624
      %v626 = vadd.f32 %v623, %v625
      %s627 = scalar_select %p125, 1, 0
      %v628 = vstv %s627
      %vm629 = vcmp.eq.s32.totalorder %v628, 1
      %v630 = vsel %vm629, %v626, 0.0
      %s631 = smul.f32 %s621, 0.003125
      %v632 = vstv %s631
      %v633 = vadd.f32 %v632, %v630
      %v635 = vlaneseq
      %v636 = vshrl.u32 %v635, 7
      %v637 = vsub.s32 0, %v636
      %v638 = vrot.slane %v633, %v637
      %639 = vset.pattern.permute.xlu0 0
      %640 = vperm.xlu0 %639, %v638
      %v641 = vpop.permute.xlu0 %640
      %v643 = vadd.f32 %v641, 0.0
      %644 = vst [vmem:[#allocation15] sm:$0xff] %v643
    $region45: #{tpu_custom_call.1} parent=1 // pred_fallthru
      _
    // Predicated region
    $region46: #{tpu_custom_call.1} parent=1 // pred_check
      _
    $region47: #{tpu_custom_call.1} parent=1 // pred_check_branch
      %646 = sbr.rel (0) target = $region49
    $region48: #{tpu_custom_call.1} parent=1 // pred_region
      %s648 = ssub.s32 128, 128
      %649 = vsyncadd [#allocation12], %s648
      %s651 = sshll.u32 [#allocation15], 4
      %s652 = int_to_ptr.vmem [resolvable:$true] %s651
      %654 = dma.vmem_to_hbm [thread:$0]  %s652, 128, %s8, [#allocation12]
    $region49: #{tpu_custom_call.1} parent=1 // pred_fallthru
      _
    // Predicated region
    $region50: #{tpu_custom_call.1} parent=1 // pred_check
      _
    $region51: #{tpu_custom_call.1} parent=1 // pred_check_branch
      %656 = sbr.rel (0) target = $region53
    $region52: #{tpu_custom_call.1} parent=1 // pred_region
      %657 = dma.done [#allocation12], 128
    $region53: #{tpu_custom_call.1} parent=1 // pred_fallthru
      _
    %658 = vsyncpa [#allocation11], 1
    %659 = vsyncpa [#allocation14], 1
    %660 = vsyncpa [#allocation12], 1

</llo_original>
